<compile_context>
chip_gen: v5e
topology: v5e:2x2
jax: 0.10.0
libtpu: 0.0.40
codegen_flags: <defaults>
</compile_context>

<pallas_src>
import jax
import jax.numpy as jnp
from jax.experimental import pallas as pl
from jax.experimental.pallas import tpu as pltpu

_LANE = 128


def _round_up(x: int, m: int) -> int:
    return ((x + m - 1) // m) * m


def _choose_tm(B: int, tm_max: int) -> int:
    """Batch-tile size: single tile for tiny B, otherwise multiples of 8 with
    at least 2 grid steps when the batch is big enough (v7x dual-TC)."""
    if B <= 8:
        return B                       # block dim == full array dim (legal)
    b8 = _round_up(B, 8)
    tm = min(tm_max, b8)
    if tm == b8 and b8 >= 16:
        tm = _round_up(b8 // 2, 8)     # split so both v7x TensorCores get work
    return tm


def _fused_mlp_kernel(x_ref, w_ref, b_ref, o_ref):
    # Single MXU matmul with f32 accumulation.  x is cast to the weight dtype
    # inside the kernel so the bf16 path runs the MXU's native input dtype
    # without any extra wrapper-side HBM traffic.
    x = x_ref[...].astype(w_ref.dtype)
    acc = jnp.dot(x, w_ref[...], preferred_element_type=jnp.float32)
    o_ref[...] = (acc + b_ref[...]).astype(o_ref.dtype)


def make_fashion_mnist_model_v0(w1, b1, w2, b2, *,
                                compute_dtype=jnp.float32,
                                out_dtype=jnp.float32,
                                tm_max=512):
    """One-time parameter prep (fuse + transpose + lane-pad); returns a jitted
    forward.

    w1: (hidden, in_features)  b1: (hidden,)     -- PyTorch nn.Linear layout
    w2: (out, hidden)          b2: (out,)
    """
    hidden, in_features = w1.shape
    out_features, hidden2 = w2.shape
    assert hidden2 == hidden

    o_pad = _round_up(out_features, _LANE)   # 10 -> 128 (lane-dense stores)

    # Offline fusion of the two bias-only linear layers (done in f32, HIGHEST
    # precision, then cast once to the compute dtype).
    w_eff = jnp.dot(w2.astype(jnp.float32), w1.astype(jnp.float32),
                    precision=jax.lax.Precision.HIGHEST).T       # (in, out)
    b_eff = jnp.dot(w2.astype(jnp.float32), b1.astype(jnp.float32),
                    precision=jax.lax.Precision.HIGHEST) + b2.astype(jnp.float32)

    # Lane-pad the output dim only; K stays at in_features (784), no K pad.
    w_eff_p = jnp.zeros((in_features, o_pad), compute_dtype)
    w_eff_p = w_eff_p.at[:, :out_features].set(w_eff.astype(compute_dtype))
    b_eff_p = jnp.zeros((1, o_pad), jnp.float32)
    b_eff_p = b_eff_p.at[0, :out_features].set(b_eff)

    def forward(x_nchw):
        B = x_nchw.shape[0]
        x_flat = x_nchw.reshape(B, -1)               # nn.Flatten() on NCHW
        assert x_flat.shape[1] == in_features

        tm = _choose_tm(B, tm_max)
        b_rows = _round_up(B, tm)
        if b_rows != B:
            # Row-pad only when the tile doesn't divide the batch (the common
            # path feeds x straight through with zero extra HBM traffic).
            x_in = jnp.zeros((b_rows, in_features), x_flat.dtype).at[:B, :].set(x_flat)
        else:
            x_in = x_flat

        grid = (b_rows // tm,)
        out_p = pl.pallas_call(
            _fused_mlp_kernel,
            out_shape=jax.ShapeDtypeStruct((b_rows, o_pad), out_dtype),
            grid_spec=pltpu.PrefetchScalarGridSpec(
                num_scalar_prefetch=0,
                grid=grid,
                in_specs=[
                    # x: streamed per batch tile; last dim == full array dim.
                    pl.BlockSpec((tm, in_features), lambda i: (i, 0)),
                    # Fused weight / bias: grid-invariant, VMEM-resident.
                    pl.BlockSpec((in_features, o_pad), lambda i: (0, 0)),
                    pl.BlockSpec((1, o_pad), lambda i: (0, 0)),
                ],
                out_specs=pl.BlockSpec((tm, o_pad), lambda i: (i, 0)),
            ),
            compiler_params=pltpu.CompilerParams(
                dimension_semantics=("parallel",),     # megacore-shard batch tiles
                vmem_limit_bytes=32 * 1024 * 1024,     # safe on every generation
            ),
        )(x_in, w_eff_p, b_eff_p)

        # Strip batch / lane padding.
        return out_p[:B, :out_features]

    return jax.jit(forward)


def _reference(x_nchw, w1, b1, w2, b2):
    x_flat = x_nchw.reshape(x_nchw.shape[0], -1)
    h = x_flat @ w1.T + b1
    return h @ w2.T + b2


if __name__ == "__main__":
    # FashionMNIST-consistent shapes: 28x28 single-channel images.
    B, C, H, W = 2, 1, 28, 28
    in_features = C * H * W           # 784
    hidden_units = 32
    output_shape = 10

    key = jax.random.PRNGKey(0)
    kx, kw1, kb1, kw2, kb2 = jax.random.split(key, 5)

    x = jax.random.normal(kx, (B, C, H, W), dtype=jnp.float32)

    # Init mimicking nn.Linear's uniform(-1/sqrt(in), 1/sqrt(in)).
    lim1 = 1.0 / jnp.sqrt(jnp.float32(in_features))
    w1 = jax.random.uniform(kw1, (hidden_units, in_features), jnp.float32, -lim1, lim1)
    b1 = jax.random.uniform(kb1, (hidden_units,), jnp.float32, -lim1, lim1)

    lim2 = 1.0 / jnp.sqrt(jnp.float32(hidden_units))
    w2 = jax.random.uniform(kw2, (output_shape, hidden_units), jnp.float32, -lim2, lim2)
    b2 = jax.random.uniform(kb2, (output_shape,), jnp.float32, -lim2, lim2)

    ref = _reference(x, w1, b1, w2, b2)

    # f32 path.  Tolerance is slightly looser than exact bit-match because the
    # offline W2@W1 fusion changes the rounding order of the two matmuls.
    fwd_f32 = make_fashion_mnist_model_v0(w1, b1, w2, b2, compute_dtype=jnp.float32)
    out_f32 = jax.block_until_ready(fwd_f32(x))
    assert out_f32.shape == (B, output_shape)
    assert jnp.allclose(out_f32, ref, atol=5e-3, rtol=1e-3)

    # bf16 weight path (x cast in-kernel), f32 accumulation and f32 output.
    fwd_bf16 = make_fashion_mnist_model_v0(w1, b1, w2, b2, compute_dtype=jnp.bfloat16)
    out_bf16 = jax.block_until_ready(fwd_bf16(x))
    assert out_bf16.shape == (B, output_shape)
    assert jnp.allclose(out_bf16.astype(jnp.float32), ref, atol=5e-2, rtol=5e-2)

    # Larger batch exercises the multi-tile (>=2 grid steps, dual-TC) path
    # with no wrapper-side padding copy (32 % 16 == 0).
    B2 = 32
    x2 = jax.random.normal(jax.random.PRNGKey(1), (B2, C, H, W), dtype=jnp.float32)
    ref2 = _reference(x2, w1, b1, w2, b2)
    out2 = jax.block_until_ready(fwd_f32(x2))
    assert out2.shape == (B2, output_shape)
    assert jnp.allclose(out2, ref2, atol=5e-3, rtol=1e-3)

    print("KERNEL_OK")
</pallas_src>

<mosaic_0001>
module attributes {stable_mosaic.version = 11 : i64} {
  func.func @_fused_mlp_kernel(%arg0: i32, %arg1: memref<2x784xf32, #tpu.memory_space<vmem>>, %arg2: memref<784x128xf32, #tpu.memory_space<vmem>>, %arg3: memref<1x128xf32, #tpu.memory_space<vmem>>, %arg4: memref<2x128xf32, #tpu.memory_space<vmem>>) attributes {dimension_semantics = [#tpu.dimension_semantics<parallel>], iteration_bounds = array<i64: 1>, scalar_prefetch = 0 : i64, scratch_operands = 0 : i64, tpu.core_type = #tpu.core_type<tc>, window_params = [{transform_indices = @transform_0, window_bounds = array<i64: 2, 784>}, {pipeline_mode = #tpu.pipeline_mode<synchronous>, transform_indices = @transform_1, window_bounds = array<i64: 784, 128>}, {pipeline_mode = #tpu.pipeline_mode<synchronous>, transform_indices = @transform_2, window_bounds = array<i64: 1, 128>}, {transform_indices = @transform_3, window_bounds = array<i64: 2, 128>}]} {
    %c0 = arith.constant 0 : index
    %c0_0 = arith.constant 0 : index
    %0 = vector.load %arg1[%c0, %c0_0] : memref<2x784xf32, #tpu.memory_space<vmem>>, vector<2x784xf32>
    %c0_1 = arith.constant 0 : index
    %c0_2 = arith.constant 0 : index
    %1 = vector.load %arg2[%c0_1, %c0_2] : memref<784x128xf32, #tpu.memory_space<vmem>>, vector<784x128xf32>
    %cst = arith.constant dense<0.000000e+00> : vector<2x128xf32>
    %2 = tpu.matmul %0, %1, %cst {dimension_numbers = #tpu.dot_dimension_numbers<[1], [0], [0], [1], [0, 0, 1, 1], [], []>} : vector<2x784xf32>, vector<784x128xf32>, vector<2x128xf32> -> vector<2x128xf32>
    %c0_3 = arith.constant 0 : index
    %c0_4 = arith.constant 0 : index
    %3 = vector.load %arg3[%c0_3, %c0_4] : memref<1x128xf32, #tpu.memory_space<vmem>>, vector<1x128xf32>
    %4 = vector.broadcast %3 : vector<1x128xf32> to vector<2x128xf32>
    %5 = arith.addf %2, %4 : vector<2x128xf32>
    %c0_5 = arith.constant 0 : index
    %c0_6 = arith.constant 0 : index
    %6 = vector.load %arg4[%c0_5, %c0_6] : memref<2x128xf32, #tpu.memory_space<vmem>>, vector<2x128xf32>
    tpu.vector_store %arg4[%c0_5, %c0_6], %5 {strides = array<i32>} : memref<2x128xf32, #tpu.memory_space<vmem>>, vector<2x128xf32>,
    return
  }
  func.func @transform_0(%arg0: i32) -> (i32, i32) {
    %c0_i32 = arith.constant 0 : i32
    %c0_i32_0 = arith.constant 0 : i32
    return %arg0, %c0_i32 : i32, i32
  }
  func.func @transform_1(%arg0: i32) -> (i32, i32) {
    %c0_i32 = arith.constant 0 : i32
    %c0_i32_0 = arith.constant 0 : i32
    %c0_i32_1 = arith.constant 0 : i32
    return %c0_i32, %c0_i32_0 : i32, i32
  }
  func.func @transform_2(%arg0: i32) -> (i32, i32) {
    %c0_i32 = arith.constant 0 : i32
    %c0_i32_0 = arith.constant 0 : i32
    %c0_i32_1 = arith.constant 0 : i32
    return %c0_i32, %c0_i32_0 : i32, i32
  }
  func.func @transform_3(%arg0: i32) -> (i32, i32) {
    %c0_i32 = arith.constant 0 : i32
    %c0_i32_0 = arith.constant 0 : i32
    return %arg0, %c0_i32 : i32, i32
  }
}

</mosaic_0001>

<llo_original>
// kernel: forward.1
$region0: #{forward.1}
  #allocation0 [shape = 'u32[]', space=smem, size = 0x4, offset = 0x4, fixed_abs, tag = 'smem constant byte address 0x4 - core index']
  #allocation1 [shape = 'u32[72,128]{1,0:T(1,128)}', space=vmem, size = 0x9000, scoped, tag = 'internal scratch']
  %s0 = inlined_call_operand.vmem [shape: f32[2,784], index: 0, kind: input, shape index: {}]
  %s1 = inlined_call_operand.hbm [shape: f32[784,128], index: 1, kind: input, shape index: {}]
  %s2 = inlined_call_operand.vmem [shape: f32[1,128], index: 2, kind: input, shape index: {}]
  %s3 = inlined_call_operand.hbm [shape: f32[2,128], index: 3, kind: output, shape index: {}]
  %s4 = sld [smem:[#allocation0]]
  $region26: #{forward.1} parent=0
    _
  %s6 = ssub.s32 1, %s4
  %s7 = scalar_select 0, %s6, %s4
  $region1: #{forward.1} parent=0
    #allocation2 [shape = 'u8[401408]{0}', space=vmem, size = 0x62000, scoped, tag = 'input window, operand 1, single buffered']
    #allocation3 [shape = 's32[1]{0}', space=sflag, size = 0x4, scoped, tag = 'scoped memory for forward.1']
    #allocation4 [shape = 's32[1]{0}', space=sflag, size = 0x4, scoped, tag = 'scoped memory for forward.1']
    #allocation5 [shape = 'u8[1024]{0}', space=vmem, size = 0x400, scoped, tag = 'output window, operand 0, single buffered']
    %8 = vsyncpa [#allocation3], 0
    %9 = vsyncpa [#allocation4], 0
    // Predicated region
    $region2: #{forward.1} parent=1 // pred_check
      _
    $region3: #{forward.1} parent=1 // pred_check_branch
      %11 = sbr.rel (0) target = $region5
    $region4: #{forward.1} parent=1 // pred_region
      _
    $region5: #{forward.1} parent=1 // pred_fallthru
      _
    // Predicated region
    $region6: #{forward.1} parent=1 // pred_check
      _
    $region7: #{forward.1} parent=1 // pred_check_branch
      %13 = sbr.rel (0) target = $region9
    $region8: #{forward.1} parent=1 // pred_region
      %15 = vsyncadd [#allocation3], 0
      %s16 = sshll.u32 %s1, 4
      %s17 = int_to_ptr.hbm [resolvable:$true] %s16
      %s18 = sshll.u32 [#allocation2], 4
      %s19 = int_to_ptr.vmem [resolvable:$true] %s18
      %24 = dma.hbm_to_vmem [thread:$0]  %s17, 12544, %s19, [#allocation3], 128, 128, 8
    $region9: #{forward.1} parent=1 // pred_fallthru
      _
    // Predicated region
    $region10: #{forward.1} parent=1 // pred_check
      _
    $region11: #{forward.1} parent=1 // pred_check_branch
      %26 = sbr.rel (0) target = $region13
    $region12: #{forward.1} parent=1 // pred_region
      _
    $region13: #{forward.1} parent=1 // pred_fallthru
      _
    // Predicated region
    $region14: #{forward.1} parent=1 // pred_check
      _
    $region15: #{forward.1} parent=1 // pred_check_branch
      %28 = sbr.rel (0) target = $region17
    $region16: #{forward.1} parent=1 // pred_region
      %30 = dma.done [#allocation3], 12544
    $region17: #{forward.1} parent=1 // pred_fallthru
      _
    %v31 = vld [vmem:[%s0] sm:$0xff]
    %v32 = vld [vmem:[%s0 + $0x8] sm:$0x3f]
    %v33 = vld [vmem:[#allocation2] sm:$0xff]
    %v34 = vld [vmem:[#allocation2 + $0x8] sm:$0xff]
    %v35 = vld [vmem:[#allocation2 + $0x10] sm:$0xff]
    %v36 = vld [vmem:[#allocation2 + $0x18] sm:$0xff]
    %v37 = vld [vmem:[#allocation2 + $0x20] sm:$0xff]
    %v38 = vld [vmem:[#allocation2 + $0x28] sm:$0xff]
    %v39 = vld [vmem:[#allocation2 + $0x30] sm:$0xff]
    %v40 = vld [vmem:[#allocation2 + $0x38] sm:$0xff]
    %v41 = vld [vmem:[#allocation2 + $0x40] sm:$0xff]
    %v42 = vld [vmem:[#allocation2 + $0x48] sm:$0xff]
    %v43 = vld [vmem:[#allocation2 + $0x50] sm:$0xff]
    %v44 = vld [vmem:[#allocation2 + $0x58] sm:$0xff]
    %v45 = vld [vmem:[#allocation2 + $0x60] sm:$0xff]
    %v46 = vld [vmem:[#allocation2 + $0x68] sm:$0xff]
    %v47 = vld [vmem:[#allocation2 + $0x70] sm:$0xff]
    %v48 = vld [vmem:[#allocation2 + $0x78] sm:$0xff]
    %v49 = vld [vmem:[#allocation2 + $0x80] sm:$0xff]
    %v50 = vld [vmem:[#allocation2 + $0x88] sm:$0xff]
    %v51 = vld [vmem:[#allocation2 + $0x90] sm:$0xff]
    %v52 = vld [vmem:[#allocation2 + $0x98] sm:$0xff]
    %v53 = vld [vmem:[#allocation2 + $0xa0] sm:$0xff]
    %v54 = vld [vmem:[#allocation2 + $0xa8] sm:$0xff]
    %v55 = vld [vmem:[#allocation2 + $0xb0] sm:$0xff]
    %v56 = vld [vmem:[#allocation2 + $0xb8] sm:$0xff]
    %v57 = vld [vmem:[#allocation2 + $0xc0] sm:$0xff]
    %v58 = vld [vmem:[#allocation2 + $0xc8] sm:$0xff]
    %v59 = vld [vmem:[#allocation2 + $0xd0] sm:$0xff]
    %v60 = vld [vmem:[#allocation2 + $0xd8] sm:$0xff]
    %v61 = vld [vmem:[#allocation2 + $0xe0] sm:$0xff]
    %v62 = vld [vmem:[#allocation2 + $0xe8] sm:$0xff]
    %v63 = vld [vmem:[#allocation2 + $0xf0] sm:$0xff]
    %v64 = vld [vmem:[#allocation2 + $0xf8] sm:$0xff]
    %v65 = vld [vmem:[#allocation2 + $0x100] sm:$0xff]
    %v66 = vld [vmem:[#allocation2 + $0x108] sm:$0xff]
    %v67 = vld [vmem:[#allocation2 + $0x110] sm:$0xff]
    %v68 = vld [vmem:[#allocation2 + $0x118] sm:$0xff]
    %v69 = vld [vmem:[#allocation2 + $0x120] sm:$0xff]
    %v70 = vld [vmem:[#allocation2 + $0x128] sm:$0xff]
    %v71 = vld [vmem:[#allocation2 + $0x130] sm:$0xff]
    %v72 = vld [vmem:[#allocation2 + $0x138] sm:$0xff]
    %v73 = vld [vmem:[#allocation2 + $0x140] sm:$0xff]
    %v74 = vld [vmem:[#allocation2 + $0x148] sm:$0xff]
    %v75 = vld [vmem:[#allocation2 + $0x150] sm:$0xff]
    %v76 = vld [vmem:[#allocation2 + $0x158] sm:$0xff]
    %v77 = vld [vmem:[#allocation2 + $0x160] sm:$0xff]
    %v78 = vld [vmem:[#allocation2 + $0x168] sm:$0xff]
    %v79 = vld [vmem:[#allocation2 + $0x170] sm:$0xff]
    %v80 = vld [vmem:[#allocation2 + $0x178] sm:$0xff]
    %v81 = vld [vmem:[#allocation2 + $0x180] sm:$0xff]
    %v82 = vld [vmem:[#allocation2 + $0x188] sm:$0xff]
    %v83 = vld [vmem:[#allocation2 + $0x190] sm:$0xff]
    %v84 = vld [vmem:[#allocation2 + $0x198] sm:$0xff]
    %v85 = vld [vmem:[#allocation2 + $0x1a0] sm:$0xff]
    %v86 = vld [vmem:[#allocation2 + $0x1a8] sm:$0xff]
    %v87 = vld [vmem:[#allocation2 + $0x1b0] sm:$0xff]
    %v88 = vld [vmem:[#allocation2 + $0x1b8] sm:$0xff]
    %v89 = vld [vmem:[#allocation2 + $0x1c0] sm:$0xff]
    %v90 = vld [vmem:[#allocation2 + $0x1c8] sm:$0xff]
    %v91 = vld [vmem:[#allocation2 + $0x1d0] sm:$0xff]
    %v92 = vld [vmem:[#allocation2 + $0x1d8] sm:$0xff]
    %v93 = vld [vmem:[#allocation2 + $0x1e0] sm:$0xff]
    %v94 = vld [vmem:[#allocation2 + $0x1e8] sm:$0xff]
    %v95 = vld [vmem:[#allocation2 + $0x1f0] sm:$0xff]
    %v96 = vld [vmem:[#allocation2 + $0x1f8] sm:$0xff]
    %v97 = vld [vmem:[#allocation2 + $0x200] sm:$0xff]
    %v98 = vld [vmem:[#allocation2 + $0x208] sm:$0xff]
    %v99 = vld [vmem:[#allocation2 + $0x210] sm:$0xff]
    %v100 = vld [vmem:[#allocation2 + $0x218] sm:$0xff]
    %v101 = vld [vmem:[#allocation2 + $0x220] sm:$0xff]
    %v102 = vld [vmem:[#allocation2 + $0x228] sm:$0xff]
    %v103 = vld [vmem:[#allocation2 + $0x230] sm:$0xff]
    %v104 = vld [vmem:[#allocation2 + $0x238] sm:$0xff]
    %v105 = vld [vmem:[#allocation2 + $0x240] sm:$0xff]
    %v106 = vld [vmem:[#allocation2 + $0x248] sm:$0xff]
    %v107 = vld [vmem:[#allocation2 + $0x250] sm:$0xff]
    %v108 = vld [vmem:[#allocation2 + $0x258] sm:$0xff]
    %v109 = vld [vmem:[#allocation2 + $0x260] sm:$0xff]
    %v110 = vld [vmem:[#allocation2 + $0x268] sm:$0xff]
    %v111 = vld [vmem:[#allocation2 + $0x270] sm:$0xff]
    %v112 = vld [vmem:[#allocation2 + $0x278] sm:$0xff]
    %v113 = vld [vmem:[#allocation2 + $0x280] sm:$0xff]
    %v114 = vld [vmem:[#allocation2 + $0x288] sm:$0xff]
    %v115 = vld [vmem:[#allocation2 + $0x290] sm:$0xff]
    %v116 = vld [vmem:[#allocation2 + $0x298] sm:$0xff]
    %v117 = vld [vmem:[#allocation2 + $0x2a0] sm:$0xff]
    %v118 = vld [vmem:[#allocation2 + $0x2a8] sm:$0xff]
    %v119 = vld [vmem:[#allocation2 + $0x2b0] sm:$0xff]
    %v120 = vld [vmem:[#allocation2 + $0x2b8] sm:$0xff]
    %v121 = vld [vmem:[#allocation2 + $0x2c0] sm:$0xff]
    %v122 = vld [vmem:[#allocation2 + $0x2c8] sm:$0xff]
    %v123 = vld [vmem:[#allocation2 + $0x2d0] sm:$0xff]
    %v124 = vld [vmem:[#allocation2 + $0x2d8] sm:$0xff]
    %v125 = vld [vmem:[#allocation2 + $0x2e0] sm:$0xff]
    %v126 = vld [vmem:[#allocation2 + $0x2e8] sm:$0xff]
    %v127 = vld [vmem:[#allocation2 + $0x2f0] sm:$0xff]
    %v128 = vld [vmem:[#allocation2 + $0x2f8] sm:$0xff]
    %v129 = vld [vmem:[#allocation2 + $0x300] sm:$0xff]
    %v130 = vld [vmem:[#allocation2 + $0x308] sm:$0xff]
    %v131 = vld [vmem:[%s2] sm:$0x1]
    %v133 = vperm.slane %v131, 0
    %137 = vst [vmem:[#allocation1] ss:$4 sm:$0xff] %v31
    %s138 = scalar_lea.vmem [#allocation1], 32
    %139 = vst [vmem:[%s138] ss:$4 sm:$0xff] %v32
    %v140 = vld.sshfl [vmem:[#allocation1] sm:$0xff pattern:$0x73625140]
    %v141 = vld.sshfl [vmem:[#allocation1 + $0x8] sm:$0xff pattern:$0x73625140]
    %v142 = vld.sshfl [vmem:[#allocation1 + $0x10] sm:$0xff pattern:$0x73625140]
    %v143 = vld.sshfl [vmem:[#allocation1 + $0x18] sm:$0xff pattern:$0x73625140]
    %v144 = vld.sshfl [vmem:[#allocation1 + $0x20] sm:$0xff pattern:$0x73625140]
    %v145 = vld.sshfl [vmem:[#allocation1 + $0x28] sm:$0xff pattern:$0x73625140]
    %v146 = vld.sshfl [vmem:[#allocation1 + $0x30] sm:$0xff pattern:$0x73625140]
    %vm153 = vcmask 130048
    %v154 = vsel %vm153, %v146, 0
    %156 = vmatpush.msra.mxu0 %v48
    %157 = vmatpush.msra.mxu0 %v47
    %158 = vmatpush.msra.mxu0 %v46
    %159 = vmatpush.msra.mxu0 %v45
    %160 = vmatpush.msra.mxu0 %v44
    %161 = vmatpush.msra.mxu0 %v43
    %162 = vmatpush.msra.mxu0 %v42
    %163 = vmatpush.msra.mxu0 %v41
    %164 = vmatpush.msra.mxu0 %v40
    %165 = vmatpush.msra.mxu0 %v39
    %166 = vmatpush.msra.mxu0 %v38
    %167 = vmatpush.msra.mxu0 %v37
    %168 = vmatpush.msra.mxu0 %v36
    %169 = vmatpush.msra.mxu0 %v35
    %170 = vmatpush.msra.mxu0 %v34
    %171 = vmatpush.msra.mxu0 %v33
    %172 = vmatmul.f32.gmra.mxu0 %v140
    %v173 = vpop.f32.mrf.mxu0
    %v174 = vadd.f32 %v133, %v173
    %175 = vdwg.mxu0
    %176 = vmatpush.msra.mxu0 %v64
    %177 = vmatpush.msra.mxu0 %v63
    %178 = vmatpush.msra.mxu0 %v62
    %179 = vmatpush.msra.mxu0 %v61
    %180 = vmatpush.msra.mxu0 %v60
    %181 = vmatpush.msra.mxu0 %v59
    %182 = vmatpush.msra.mxu0 %v58
    %183 = vmatpush.msra.mxu0 %v57
    %184 = vmatpush.msra.mxu0 %v56
    %185 = vmatpush.msra.mxu0 %v55
    %186 = vmatpush.msra.mxu0 %v54
    %187 = vmatpush.msra.mxu0 %v53
    %188 = vmatpush.msra.mxu0 %v52
    %189 = vmatpush.msra.mxu0 %v51
    %190 = vmatpush.msra.mxu0 %v50
    %191 = vmatpush.msra.mxu0 %v49
    %192 = vmatmul.f32.gmra.mxu0 %v141
    %v193 = vpop.f32.mrf.mxu0
    %v194 = vadd.f32 %v174, %v193
    %195 = vdwg.mxu0
    %196 = vmatpush.msra.mxu0 %v80
    %197 = vmatpush.msra.mxu0 %v79
    %198 = vmatpush.msra.mxu0 %v78
    %199 = vmatpush.msra.mxu0 %v77
    %200 = vmatpush.msra.mxu0 %v76
    %201 = vmatpush.msra.mxu0 %v75
    %202 = vmatpush.msra.mxu0 %v74
    %203 = vmatpush.msra.mxu0 %v73
    %204 = vmatpush.msra.mxu0 %v72
    %205 = vmatpush.msra.mxu0 %v71
    %206 = vmatpush.msra.mxu0 %v70
    %207 = vmatpush.msra.mxu0 %v69
    %208 = vmatpush.msra.mxu0 %v68
    %209 = vmatpush.msra.mxu0 %v67
    %210 = vmatpush.msra.mxu0 %v66
    %211 = vmatpush.msra.mxu0 %v65
    %212 = vmatmul.f32.gmra.mxu0 %v142
    %v213 = vpop.f32.mrf.mxu0
    %v214 = vadd.f32 %v194, %v213
    %215 = vdwg.mxu0
    %216 = vmatpush.msra.mxu0 %v96
    %217 = vmatpush.msra.mxu0 %v95
    %218 = vmatpush.msra.mxu0 %v94
    %219 = vmatpush.msra.mxu0 %v93
    %220 = vmatpush.msra.mxu0 %v92
    %221 = vmatpush.msra.mxu0 %v91
    %222 = vmatpush.msra.mxu0 %v90
    %223 = vmatpush.msra.mxu0 %v89
    %224 = vmatpush.msra.mxu0 %v88
    %225 = vmatpush.msra.mxu0 %v87
    %226 = vmatpush.msra.mxu0 %v86
    %227 = vmatpush.msra.mxu0 %v85
    %228 = vmatpush.msra.mxu0 %v84
    %229 = vmatpush.msra.mxu0 %v83
    %230 = vmatpush.msra.mxu0 %v82
    %231 = vmatpush.msra.mxu0 %v81
    %232 = vmatmul.f32.gmra.mxu0 %v143
    %v233 = vpop.f32.mrf.mxu0
    %v234 = vadd.f32 %v214, %v233
    %235 = vdwg.mxu0
    %236 = vmatpush.msra.mxu0 %v112
    %237 = vmatpush.msra.mxu0 %v111
    %238 = vmatpush.msra.mxu0 %v110
    %239 = vmatpush.msra.mxu0 %v109
    %240 = vmatpush.msra.mxu0 %v108
    %241 = vmatpush.msra.mxu0 %v107
    %242 = vmatpush.msra.mxu0 %v106
    %243 = vmatpush.msra.mxu0 %v105
    %244 = vmatpush.msra.mxu0 %v104
    %245 = vmatpush.msra.mxu0 %v103
    %246 = vmatpush.msra.mxu0 %v102
    %247 = vmatpush.msra.mxu0 %v101
    %248 = vmatpush.msra.mxu0 %v100
    %249 = vmatpush.msra.mxu0 %v99
    %250 = vmatpush.msra.mxu0 %v98
    %251 = vmatpush.msra.mxu0 %v97
    %252 = vmatmul.f32.gmra.mxu0 %v144
    %v253 = vpop.f32.mrf.mxu0
    %v254 = vadd.f32 %v234, %v253
    %255 = vdwg.mxu0
    %256 = vmatpush.msra.mxu0 %v128
    %257 = vmatpush.msra.mxu0 %v127
    %258 = vmatpush.msra.mxu0 %v126
    %259 = vmatpush.msra.mxu0 %v125
    %260 = vmatpush.msra.mxu0 %v124
    %261 = vmatpush.msra.mxu0 %v123
    %262 = vmatpush.msra.mxu0 %v122
    %263 = vmatpush.msra.mxu0 %v121
    %264 = vmatpush.msra.mxu0 %v120
    %265 = vmatpush.msra.mxu0 %v119
    %266 = vmatpush.msra.mxu0 %v118
    %267 = vmatpush.msra.mxu0 %v117
    %268 = vmatpush.msra.mxu0 %v116
    %269 = vmatpush.msra.mxu0 %v115
    %270 = vmatpush.msra.mxu0 %v114
    %271 = vmatpush.msra.mxu0 %v113
    %272 = vmatmul.f32.gmra.mxu0 %v145
    %v273 = vpop.f32.mrf.mxu0
    %v274 = vadd.f32 %v254, %v273
    %275 = vdwg.mxu0
    %276 = vmatpush.msra.mxu0 0.0
    %277 = vmatpush.msra.mxu0 0.0
    %278 = vmatpush.msra.mxu0 0.0
    %279 = vmatpush.msra.mxu0 0.0
    %280 = vmatpush.msra.mxu0 0.0
    %281 = vmatpush.msra.mxu0 0.0
    %282 = vmatpush.msra.mxu0 0.0
    %283 = vmatpush.msra.mxu0 0.0
    %284 = vmatpush.msra.mxu0 0.0
    %285 = vmatpush.msra.mxu0 0.0
    %286 = vmatpush.msra.mxu0 0.0
    %287 = vmatpush.msra.mxu0 0.0
    %288 = vmatpush.msra.mxu0 0.0
    %289 = vmatpush.msra.mxu0 0.0
    %290 = vmatpush.msra.mxu0 %v130
    %291 = vmatpush.msra.mxu0 %v129
    %292 = vmatmul.f32.gmra.mxu0 %v154
    %v293 = vpop.f32.mrf.mxu0
    %v294 = vadd.f32 %v274, %v293
    %295 = vdwg.mxu0
    %296 = vst [vmem:[#allocation5] sm:$0x3] %v294
    // Predicated region
    $region18: #{forward.1} parent=1 // pred_check
      _
    $region19: #{forward.1} parent=1 // pred_check_branch
      %298 = sbr.rel (0) target = $region21
    $region20: #{forward.1} parent=1 // pred_region
      %300 = vsyncadd [#allocation4], 0
      %s302 = sshll.u32 [#allocation5], 4
      %s303 = int_to_ptr.vmem [resolvable:$true] %s302
      %s304 = sshll.u32 %s3, 4
      %s305 = int_to_ptr.hbm [resolvable:$true] %s304
      %307 = dma.vmem_to_hbm [thread:$0]  %s303, 32, %s305, [#allocation4]
    $region21: #{forward.1} parent=1 // pred_fallthru
      _
    // Predicated region
    $region22: #{forward.1} parent=1 // pred_check
      _
    $region23: #{forward.1} parent=1 // pred_check_branch
      %309 = sbr.rel (0) target = $region25
    $region24: #{forward.1} parent=1 // pred_region
      %311 = dma.done [#allocation4], 32
    $region25: #{forward.1} parent=1 // pred_fallthru
      _
    %312 = vsyncpa [#allocation3], 1
    %313 = vsyncpa [#allocation4], 1

</llo_original>
